<compile_context>
chip_gen: v6e
topology: v6e:2x2x1
jax: 0.10.0
libtpu: 0.0.40
codegen_flags: <defaults>
</compile_context>

<pallas_src>
from functools import partial

import jax
import jax.numpy as jnp
from jax.experimental import pallas as pl
from jax.experimental.pallas import tpu as pltpu

VOCAB = 256
D_MODEL = 32
MAX_POS = 64


def _gather_logits_kernel(tok_sref, pos_sref, len_sref, etab_ref, ptab_ref, o_ref):
    # tok_sref / pos_sref: (S_out,) int32 in SMEM   len_sref: (1,) int32 in SMEM
    # etab_ref: (VOCAB, TN) f32   ptab_ref: (MAX_POS, TN) f32   o_ref: (S_out, TN) f32
    s_out = o_ref.shape[0]
    n_tok_rows = etab_ref.shape[0]
    n_pos_rows = ptab_ref.shape[0]
    n_valid = len_sref[0]

    def row(i, carry):
        tok_i = tok_sref[i]
        pos_i = pos_sref[i]
        # Clamp like jnp.take(mode='clip'); invalid rows are zeroed by the masks
        # below (multiply-by-0 gives exact zeros, matching torch's explicit padding).
        e_row = etab_ref[pl.ds(jnp.clip(tok_i, 0, n_tok_rows - 1), 1), :]   # (1, TN)
        p_row = ptab_ref[pl.ds(jnp.clip(pos_i, 0, n_pos_rows - 1), 1), :]   # (1, TN)
        valid = i < n_valid
        e_mask = valid.astype(jnp.float32)
        p_mask = jnp.logical_and(valid, pos_i >= 0).astype(jnp.float32)
        o_ref[pl.ds(i, 1), :] = (e_row * e_mask + p_row * p_mask).astype(o_ref.dtype)
        return carry

    jax.lax.fori_loop(0, s_out, row, 0, unroll=True)


def fused_logits(tok_ids, pos_ids, seq_len, tok_table, pos_table, *, tn=None):
    """logits[i, :] = tok_table[tok_ids[i]] + pos_table[pos_ids[i]] for i < seq_len,
    exact zeros otherwise; pos contribution dropped for pos_ids[i] < 0."""
    s_out = tok_ids.shape[0]
    vocab_rows, v = tok_table.shape
    max_pos, v2 = pos_table.shape
    assert v == v2
    if tn is None:
        # Single lane-dense block at these sizes.  For realistic vocabs cap tn to the
        # scoped-VMEM budget (v5e ~16 MiB, v7x 32 MiB) and/or use V//2 on v7x so the
        # "parallel" vocab axis shards across both TensorCores.
        tn = v
    assert v % tn == 0 and tn % 128 == 0

    return pl.pallas_call(
        _gather_logits_kernel,
        out_shape=jax.ShapeDtypeStruct((s_out, v), jnp.float32),
        grid_spec=pltpu.PrefetchScalarGridSpec(
            num_scalar_prefetch=3,          # tok_ids, pos_ids, seq_len -> SMEM
            grid=(v // tn,),                # == (1,) here; kept so larger vocabs tile
            in_specs=[
                pl.BlockSpec((vocab_rows, tn), lambda j, tok, pos, n: (0, j)),
                pl.BlockSpec((max_pos, tn), lambda j, tok, pos, n: (0, j)),
            ],
            out_specs=pl.BlockSpec((s_out, tn), lambda j, tok, pos, n: (0, j)),
        ),
        compiler_params=pltpu.CompilerParams(
            dimension_semantics=("parallel",),
        ),
    )(tok_ids, pos_ids, seq_len, tok_table, pos_table)


@partial(jax.jit, static_argnames=("out_seq", "batch", "has_pos"))
def _pipeline_forward(tok_table, pos_table, tokens, input_pos, seq_len,
                      *, out_seq, batch, has_pos):
    """One fused, shape-static dispatch: id prep + Pallas kernel + batch broadcast."""
    tok_row = tokens[0].astype(jnp.int32)                              # (S,)
    s = tok_row.shape[0]
    if has_pos:
        pos_row = (input_pos[0] if input_pos.ndim == 2 else input_pos)
        pos_row = pos_row.astype(jnp.int32)[:s]
    else:
        # No input_pos => positional contribution is dropped (id = -1), matching the
        # synthetic wrapped model's semantics.
        pos_row = jnp.full((s,), -1, jnp.int32)

    if s >= out_seq:
        tok_ids = tok_row[:out_seq]
        pos_ids = pos_row[:out_seq]
    else:
        tok_ids = jnp.concatenate([tok_row, jnp.zeros((out_seq - s,), jnp.int32)])
        pos_ids = jnp.concatenate([pos_row, jnp.full((out_seq - s,), -1, jnp.int32)])

    logits = fused_logits(tok_ids, pos_ids, seq_len, tok_table, pos_table)

    # Batch "repeat" of the single microbatch row (== torch output.repeat(B, 1, 1)).
    return jnp.broadcast_to(logits[None], (batch, out_seq, logits.shape[-1]))


class SimplePipelineWrapperPallas:
    """JAX/Pallas port of SimplePipelineWrapper wrapping a synthetic token model."""

    def __init__(self, embed, pos_embed, head_w, expected_seq_len=None):
        self.embed = embed            # (VOCAB, D)
        self.pos_embed = pos_embed    # (MAX_POS, D)
        self.head_w = head_w          # (D, VOCAB), bias-free
        # Fuse embedding tables with the linear head once (legal: head is bias-free).
        self.tok_table = jnp.dot(embed, head_w, preferred_element_type=jnp.float32)
        self.pos_table = jnp.dot(pos_embed, head_w, preferred_element_type=jnp.float32)
        self.expected_seq_len = expected_seq_len
        self._forward_count = 0

    def __call__(self, tokens, input_pos=None, **kwargs):
        tokens = jnp.asarray(tokens)
        if tokens.ndim == 1:
            tokens = tokens[None, :]
        expected_batch_size = int(tokens.shape[0])
        s_full = int(tokens.shape[1])

        model_kwargs = dict(kwargs)
        for key in ("microbatch_indices", "actual_seq_len", "real_mask"):
            model_kwargs.pop(key, None)
        # TODO(synk): model_kwargs forwarding is host-side glue only; the synthetic
        #             wrapped model takes no extra kwargs.

        actual_seq_len = kwargs.get("actual_seq_len", None)
        a = s_full if actual_seq_len is None else min(int(actual_seq_len), s_full)
        out_seq = a
        if self.expected_seq_len is not None and out_seq < self.expected_seq_len:
            out_seq = self.expected_seq_len

        has_pos = input_pos is not None
        pos_arg = jnp.asarray(input_pos) if has_pos else jnp.zeros((1,), jnp.int32)

        out = _pipeline_forward(
            self.tok_table, self.pos_table, tokens, pos_arg,
            jnp.asarray([a], jnp.int32),
            out_seq=out_seq, batch=expected_batch_size, has_pos=has_pos)

        self._forward_count += 1
        return out


def _reference(embed, pos_embed, head_w, tokens, input_pos, actual_seq_len,
               expected_seq_len):
    """Pure-JAX reference of the same semantics, for a correctness check."""
    b, s_full = tokens.shape
    a = s_full if actual_seq_len is None else min(actual_seq_len, s_full)
    tok = tokens[0, :a]
    h = jnp.take(embed, tok, axis=0)
    if input_pos is not None:
        pos = (input_pos[0] if input_pos.ndim == 2 else input_pos)[:a]
        h = h + jnp.take(pos_embed, pos, axis=0)
    logits = h @ head_w                                              # (a, V)
    out_seq = max(a, expected_seq_len or a)
    if out_seq > a:
        logits = jnp.concatenate(
            [logits, jnp.zeros((out_seq - a, logits.shape[1]), logits.dtype)], axis=0)
    return jnp.broadcast_to(logits[None], (b, out_seq, logits.shape[1]))


if __name__ == "__main__":
    key = jax.random.PRNGKey(0)
    k_emb, k_pos, k_head, k_tok = jax.random.split(key, 4)

    # Deterministic synthetic parameters for the wrapped model.
    embed = jax.random.normal(k_emb, (VOCAB, D_MODEL), jnp.float32) * 0.02
    pos_embed = jax.random.normal(k_pos, (MAX_POS, D_MODEL), jnp.float32) * 0.02
    head_w = jax.random.normal(k_head, (D_MODEL, VOCAB), jnp.float32) * 0.02

    wrapper = SimplePipelineWrapperPallas(embed, pos_embed, head_w, expected_seq_len=16)

    # Small inputs: batch=2, seq=8, truncated to actual_seq_len, padded back to 16.
    B, S = 2, 8
    tokens = jax.random.randint(k_tok, (B, S), 0, VOCAB, dtype=jnp.int32)
    input_pos = jnp.broadcast_to(jnp.arange(S, dtype=jnp.int32)[None, :], (B, S))

    out = wrapper(tokens, input_pos=input_pos, actual_seq_len=6)
    out = jax.block_until_ready(out)
    assert out.shape == (B, 16, VOCAB), out.shape
    ref = _reference(embed, pos_embed, head_w, tokens, input_pos, 6, 16)
    assert jnp.allclose(out, ref, atol=1e-4, rtol=1e-4)
    assert jnp.array_equal(out[0], out[1])          # batch rows repeat microbatch-0
    assert jnp.all(out[:, 6:, :] == 0)              # padded positions are exact zeros

    # A different actual_seq_len hits the SAME compiled executable (length is a
    # traced SMEM scalar, not a shape).
    out2 = jax.block_until_ready(wrapper(tokens, input_pos=input_pos, actual_seq_len=4))
    ref2 = _reference(embed, pos_embed, head_w, tokens, input_pos, 4, 16)
    assert out2.shape == (B, 16, VOCAB)
    assert jnp.allclose(out2, ref2, atol=1e-4, rtol=1e-4)
    assert jnp.all(out2[:, 4:, :] == 0)

    print("KERNEL_OK")
</pallas_src>

<mosaic_0001>
module attributes {stable_mosaic.version = 11 : i64} {
  func.func @_gather_logits_kernel(%arg0: i32, %arg1: memref<16xi32, #tpu.memory_space<smem>>, %arg2: memref<16xi32, #tpu.memory_space<smem>>, %arg3: memref<1xi32, #tpu.memory_space<smem>>, %arg4: memref<256x256xf32, #tpu.memory_space<vmem>>, %arg5: memref<64x256xf32, #tpu.memory_space<vmem>>, %arg6: memref<16x256xf32, #tpu.memory_space<vmem>>) attributes {dimension_semantics = [#tpu.dimension_semantics<parallel>], iteration_bounds = array<i64: 1>, scalar_prefetch = 3 : i64, scratch_operands = 0 : i64, tpu.core_type = #tpu.core_type<tc>, window_params = [{transform_indices = @transform_0, window_bounds = array<i64: 256, 256>}, {transform_indices = @transform_1, window_bounds = array<i64: 64, 256>}, {transform_indices = @transform_2, window_bounds = array<i64: 16, 256>}]} {
    %c0 = arith.constant 0 : index
    %0 = memref.load %arg3[%c0] : memref<1xi32, #tpu.memory_space<smem>>
    %c0_i32 = arith.constant 0 : i32
    %1 = arith.index_cast %c0_i32 : i32 to index
    %2 = memref.load %arg1[%1] : memref<16xi32, #tpu.memory_space<smem>>
    %3 = arith.index_cast %c0_i32 : i32 to index
    %4 = memref.load %arg2[%3] : memref<16xi32, #tpu.memory_space<smem>>
    %c0_i32_0 = arith.constant 0 : i32
    %c255_i32 = arith.constant 255 : i32
    %5 = arith.maxsi %c0_i32_0, %2 : i32
    %6 = arith.minsi %c255_i32, %5 : i32
    %7 = arith.index_cast %6 : i32 to index
    %c0_1 = arith.constant 0 : index
    %8 = vector.load %arg4[%7, %c0_1] : memref<256x256xf32, #tpu.memory_space<vmem>>, vector<1x256xf32>
    %c0_i32_2 = arith.constant 0 : i32
    %c63_i32 = arith.constant 63 : i32
    %9 = arith.maxsi %c0_i32_2, %4 : i32
    %10 = arith.minsi %c63_i32, %9 : i32
    %11 = arith.index_cast %10 : i32 to index
    %c0_3 = arith.constant 0 : index
    %12 = vector.load %arg5[%11, %c0_3] : memref<64x256xf32, #tpu.memory_space<vmem>>, vector<1x256xf32>
    %13 = arith.cmpi slt, %c0_i32, %0 : i32
    %14 = arith.extui %13 : i1 to i32
    %15 = arith.sitofp %14 : i32 to f32
    %c0_i32_4 = arith.constant 0 : i32
    %16 = arith.cmpi sge, %4, %c0_i32_4 : i32
    %17 = arith.andi %13, %16 : i1
    %18 = arith.extui %17 : i1 to i32
    %19 = arith.sitofp %18 : i32 to f32
    %20 = vector.broadcast %15 : f32 to vector<1x256xf32>
    %21 = arith.mulf %8, %20 : vector<1x256xf32>
    %22 = vector.broadcast %19 : f32 to vector<1x256xf32>
    %23 = arith.mulf %12, %22 : vector<1x256xf32>
    %24 = arith.addf %21, %23 : vector<1x256xf32>
    %25 = arith.index_cast %c0_i32 : i32 to index
    %c0_5 = arith.constant 0 : index
    %26 = vector.load %arg6[%25, %c0_5] : memref<16x256xf32, #tpu.memory_space<vmem>>, vector<1x256xf32>
    tpu.vector_store %arg6[%25, %c0_5], %24 {strides = array<i32>} : memref<16x256xf32, #tpu.memory_space<vmem>>, vector<1x256xf32>,
    %c1_i32 = arith.constant 1 : i32
    %27 = arith.index_cast %c1_i32 : i32 to index
    %28 = memref.load %arg1[%27] : memref<16xi32, #tpu.memory_space<smem>>
    %29 = arith.index_cast %c1_i32 : i32 to index
    %30 = memref.load %arg2[%29] : memref<16xi32, #tpu.memory_space<smem>>
    %c0_i32_6 = arith.constant 0 : i32
    %c255_i32_7 = arith.constant 255 : i32
    %31 = arith.maxsi %c0_i32_6, %28 : i32
    %32 = arith.minsi %c255_i32_7, %31 : i32
    %33 = arith.index_cast %32 : i32 to index
    %c0_8 = arith.constant 0 : index
    %34 = vector.load %arg4[%33, %c0_8] : memref<256x256xf32, #tpu.memory_space<vmem>>, vector<1x256xf32>
    %c0_i32_9 = arith.constant 0 : i32
    %c63_i32_10 = arith.constant 63 : i32
    %35 = arith.maxsi %c0_i32_9, %30 : i32
    %36 = arith.minsi %c63_i32_10, %35 : i32
    %37 = arith.index_cast %36 : i32 to index
    %c0_11 = arith.constant 0 : index
    %38 = vector.load %arg5[%37, %c0_11] : memref<64x256xf32, #tpu.memory_space<vmem>>, vector<1x256xf32>
    %39 = arith.cmpi slt, %c1_i32, %0 : i32
    %40 = arith.extui %39 : i1 to i32
    %41 = arith.sitofp %40 : i32 to f32
    %c0_i32_12 = arith.constant 0 : i32
    %42 = arith.cmpi sge, %30, %c0_i32_12 : i32
    %43 = arith.andi %39, %42 : i1
    %44 = arith.extui %43 : i1 to i32
    %45 = arith.sitofp %44 : i32 to f32
    %46 = vector.broadcast %41 : f32 to vector<1x256xf32>
    %47 = arith.mulf %34, %46 : vector<1x256xf32>
    %48 = vector.broadcast %45 : f32 to vector<1x256xf32>
    %49 = arith.mulf %38, %48 : vector<1x256xf32>
    %50 = arith.addf %47, %49 : vector<1x256xf32>
    %51 = arith.index_cast %c1_i32 : i32 to index
    %c0_13 = arith.constant 0 : index
    %52 = vector.load %arg6[%51, %c0_13] : memref<16x256xf32, #tpu.memory_space<vmem>>, vector<1x256xf32>
    tpu.vector_store %arg6[%51, %c0_13], %50 {strides = array<i32>} : memref<16x256xf32, #tpu.memory_space<vmem>>, vector<1x256xf32>,
    %c2_i32 = arith.constant 2 : i32
    %53 = arith.index_cast %c2_i32 : i32 to index
    %54 = memref.load %arg1[%53] : memref<16xi32, #tpu.memory_space<smem>>
    %55 = arith.index_cast %c2_i32 : i32 to index
    %56 = memref.load %arg2[%55] : memref<16xi32, #tpu.memory_space<smem>>
    %c0_i32_14 = arith.constant 0 : i32
    %c255_i32_15 = arith.constant 255 : i32
    %57 = arith.maxsi %c0_i32_14, %54 : i32
    %58 = arith.minsi %c255_i32_15, %57 : i32
    %59 = arith.index_cast %58 : i32 to index
    %c0_16 = arith.constant 0 : index
    %60 = vector.load %arg4[%59, %c0_16] : memref<256x256xf32, #tpu.memory_space<vmem>>, vector<1x256xf32>
    %c0_i32_17 = arith.constant 0 : i32
    %c63_i32_18 = arith.constant 63 : i32
    %61 = arith.maxsi %c0_i32_17, %56 : i32
    %62 = arith.minsi %c63_i32_18, %61 : i32
    %63 = arith.index_cast %62 : i32 to index
    %c0_19 = arith.constant 0 : index
    %64 = vector.load %arg5[%63, %c0_19] : memref<64x256xf32, #tpu.memory_space<vmem>>, vector<1x256xf32>
    %65 = arith.cmpi slt, %c2_i32, %0 : i32
    %66 = arith.extui %65 : i1 to i32
    %67 = arith.sitofp %66 : i32 to f32
    %c0_i32_20 = arith.constant 0 : i32
    %68 = arith.cmpi sge, %56, %c0_i32_20 : i32
    %69 = arith.andi %65, %68 : i1
    %70 = arith.extui %69 : i1 to i32
    %71 = arith.sitofp %70 : i32 to f32
    %72 = vector.broadcast %67 : f32 to vector<1x256xf32>
    %73 = arith.mulf %60, %72 : vector<1x256xf32>
    %74 = vector.broadcast %71 : f32 to vector<1x256xf32>
    %75 = arith.mulf %64, %74 : vector<1x256xf32>
    %76 = arith.addf %73, %75 : vector<1x256xf32>
    %77 = arith.index_cast %c2_i32 : i32 to index
    %c0_21 = arith.constant 0 : index
    %78 = vector.load %arg6[%77, %c0_21] : memref<16x256xf32, #tpu.memory_space<vmem>>, vector<1x256xf32>
    tpu.vector_store %arg6[%77, %c0_21], %76 {strides = array<i32>} : memref<16x256xf32, #tpu.memory_space<vmem>>, vector<1x256xf32>,
    %c3_i32 = arith.constant 3 : i32
    %79 = arith.index_cast %c3_i32 : i32 to index
    %80 = memref.load %arg1[%79] : memref<16xi32, #tpu.memory_space<smem>>
    %81 = arith.index_cast %c3_i32 : i32 to index
    %82 = memref.load %arg2[%81] : memref<16xi32, #tpu.memory_space<smem>>
    %c0_i32_22 = arith.constant 0 : i32
    %c255_i32_23 = arith.constant 255 : i32
    %83 = arith.maxsi %c0_i32_22, %80 : i32
    %84 = arith.minsi %c255_i32_23, %83 : i32
    %85 = arith.index_cast %84 : i32 to index
    %c0_24 = arith.constant 0 : index
    %86 = vector.load %arg4[%85, %c0_24] : memref<256x256xf32, #tpu.memory_space<vmem>>, vector<1x256xf32>
    %c0_i32_25 = arith.constant 0 : i32
    %c63_i32_26 = arith.constant 63 : i32
    %87 = arith.maxsi %c0_i32_25, %82 : i32
    %88 = arith.minsi %c63_i32_26, %87 : i32
    %89 = arith.index_cast %88 : i32 to index
    %c0_27 = arith.constant 0 : index
    %90 = vector.load %arg5[%89, %c0_27] : memref<64x256xf32, #tpu.memory_space<vmem>>, vector<1x256xf32>
    %91 = arith.cmpi slt, %c3_i32, %0 : i32
    %92 = arith.extui %91 : i1 to i32
    %93 = arith.sitofp %92 : i32 to f32
    %c0_i32_28 = arith.constant 0 : i32
    %94 = arith.cmpi sge, %82, %c0_i32_28 : i32
    %95 = arith.andi %91, %94 : i1
    %96 = arith.extui %95 : i1 to i32
    %97 = arith.sitofp %96 : i32 to f32
    %98 = vector.broadcast %93 : f32 to vector<1x256xf32>
    %99 = arith.mulf %86, %98 : vector<1x256xf32>
    %100 = vector.broadcast %97 : f32 to vector<1x256xf32>
    %101 = arith.mulf %90, %100 : vector<1x256xf32>
    %102 = arith.addf %99, %101 : vector<1x256xf32>
    %103 = arith.index_cast %c3_i32 : i32 to index
    %c0_29 = arith.constant 0 : index
    %104 = vector.load %arg6[%103, %c0_29] : memref<16x256xf32, #tpu.memory_space<vmem>>, vector<1x256xf32>
    tpu.vector_store %arg6[%103, %c0_29], %102 {strides = array<i32>} : memref<16x256xf32, #tpu.memory_space<vmem>>, vector<1x256xf32>,
    %c4_i32 = arith.constant 4 : i32
    %105 = arith.index_cast %c4_i32 : i32 to index
    %106 = memref.load %arg1[%105] : memref<16xi32, #tpu.memory_space<smem>>
    %107 = arith.index_cast %c4_i32 : i32 to index
    %108 = memref.load %arg2[%107] : memref<16xi32, #tpu.memory_space<smem>>
    %c0_i32_30 = arith.constant 0 : i32
    %c255_i32_31 = arith.constant 255 : i32
    %109 = arith.maxsi %c0_i32_30, %106 : i32
    %110 = arith.minsi %c255_i32_31, %109 : i32
    %111 = arith.index_cast %110 : i32 to index
    %c0_32 = arith.constant 0 : index
    %112 = vector.load %arg4[%111, %c0_32] : memref<256x256xf32, #tpu.memory_space<vmem>>, vector<1x256xf32>
    %c0_i32_33 = arith.constant 0 : i32
    %c63_i32_34 = arith.constant 63 : i32
    %113 = arith.maxsi %c0_i32_33, %108 : i32
    %114 = arith.minsi %c63_i32_34, %113 : i32
    %115 = arith.index_cast %114 : i32 to index
    %c0_35 = arith.constant 0 : index
    %116 = vector.load %arg5[%115, %c0_35] : memref<64x256xf32, #tpu.memory_space<vmem>>, vector<1x256xf32>
    %117 = arith.cmpi slt, %c4_i32, %0 : i32
    %118 = arith.extui %117 : i1 to i32
    %119 = arith.sitofp %118 : i32 to f32
    %c0_i32_36 = arith.constant 0 : i32
    %120 = arith.cmpi sge, %108, %c0_i32_36 : i32
    %121 = arith.andi %117, %120 : i1
    %122 = arith.extui %121 : i1 to i32
    %123 = arith.sitofp %122 : i32 to f32
    %124 = vector.broadcast %119 : f32 to vector<1x256xf32>
    %125 = arith.mulf %112, %124 : vector<1x256xf32>
    %126 = vector.broadcast %123 : f32 to vector<1x256xf32>
    %127 = arith.mulf %116, %126 : vector<1x256xf32>
    %128 = arith.addf %125, %127 : vector<1x256xf32>
    %129 = arith.index_cast %c4_i32 : i32 to index
    %c0_37 = arith.constant 0 : index
    %130 = vector.load %arg6[%129, %c0_37] : memref<16x256xf32, #tpu.memory_space<vmem>>, vector<1x256xf32>
    tpu.vector_store %arg6[%129, %c0_37], %128 {strides = array<i32>} : memref<16x256xf32, #tpu.memory_space<vmem>>, vector<1x256xf32>,
    %c5_i32 = arith.constant 5 : i32
    %131 = arith.index_cast %c5_i32 : i32 to index
    %132 = memref.load %arg1[%131] : memref<16xi32, #tpu.memory_space<smem>>
    %133 = arith.index_cast %c5_i32 : i32 to index
    %134 = memref.load %arg2[%133] : memref<16xi32, #tpu.memory_space<smem>>
    %c0_i32_38 = arith.constant 0 : i32
    %c255_i32_39 = arith.constant 255 : i32
    %135 = arith.maxsi %c0_i32_38, %132 : i32
    %136 = arith.minsi %c255_i32_39, %135 : i32
    %137 = arith.index_cast %136 : i32 to index
    %c0_40 = arith.constant 0 : index
    %138 = vector.load %arg4[%137, %c0_40] : memref<256x256xf32, #tpu.memory_space<vmem>>, vector<1x256xf32>
    %c0_i32_41 = arith.constant 0 : i32
    %c63_i32_42 = arith.constant 63 : i32
    %139 = arith.maxsi %c0_i32_41, %134 : i32
    %140 = arith.minsi %c63_i32_42, %139 : i32
    %141 = arith.index_cast %140 : i32 to index
    %c0_43 = arith.constant 0 : index
    %142 = vector.load %arg5[%141, %c0_43] : memref<64x256xf32, #tpu.memory_space<vmem>>, vector<1x256xf32>
    %143 = arith.cmpi slt, %c5_i32, %0 : i32
    %144 = arith.extui %143 : i1 to i32
    %145 = arith.sitofp %144 : i32 to f32
    %c0_i32_44 = arith.constant 0 : i32
    %146 = arith.cmpi sge, %134, %c0_i32_44 : i32
    %147 = arith.andi %143, %146 : i1
    %148 = arith.extui %147 : i1 to i32
    %149 = arith.sitofp %148 : i32 to f32
    %150 = vector.broadcast %145 : f32 to vector<1x256xf32>
    %151 = arith.mulf %138, %150 : vector<1x256xf32>
    %152 = vector.broadcast %149 : f32 to vector<1x256xf32>
    %153 = arith.mulf %142, %152 : vector<1x256xf32>
    %154 = arith.addf %151, %153 : vector<1x256xf32>
    %155 = arith.index_cast %c5_i32 : i32 to index
    %c0_45 = arith.constant 0 : index
    %156 = vector.load %arg6[%155, %c0_45] : memref<16x256xf32, #tpu.memory_space<vmem>>, vector<1x256xf32>
    tpu.vector_store %arg6[%155, %c0_45], %154 {strides = array<i32>} : memref<16x256xf32, #tpu.memory_space<vmem>>, vector<1x256xf32>,
    %c6_i32 = arith.constant 6 : i32
    %157 = arith.index_cast %c6_i32 : i32 to index
    %158 = memref.load %arg1[%157] : memref<16xi32, #tpu.memory_space<smem>>
    %159 = arith.index_cast %c6_i32 : i32 to index
    %160 = memref.load %arg2[%159] : memref<16xi32, #tpu.memory_space<smem>>
    %c0_i32_46 = arith.constant 0 : i32
    %c255_i32_47 = arith.constant 255 : i32
    %161 = arith.maxsi %c0_i32_46, %158 : i32
    %162 = arith.minsi %c255_i32_47, %161 : i32
    %163 = arith.index_cast %162 : i32 to index
    %c0_48 = arith.constant 0 : index
    %164 = vector.load %arg4[%163, %c0_48] : memref<256x256xf32, #tpu.memory_space<vmem>>, vector<1x256xf32>
    %c0_i32_49 = arith.constant 0 : i32
    %c63_i32_50 = arith.constant 63 : i32
    %165 = arith.maxsi %c0_i32_49, %160 : i32
    %166 = arith.minsi %c63_i32_50, %165 : i32
    %167 = arith.index_cast %166 : i32 to index
    %c0_51 = arith.constant 0 : index
    %168 = vector.load %arg5[%167, %c0_51] : memref<64x256xf32, #tpu.memory_space<vmem>>, vector<1x256xf32>
    %169 = arith.cmpi slt, %c6_i32, %0 : i32
    %170 = arith.extui %169 : i1 to i32
    %171 = arith.sitofp %170 : i32 to f32
    %c0_i32_52 = arith.constant 0 : i32
    %172 = arith.cmpi sge, %160, %c0_i32_52 : i32
    %173 = arith.andi %169, %172 : i1
    %174 = arith.extui %173 : i1 to i32
    %175 = arith.sitofp %174 : i32 to f32
    %176 = vector.broadcast %171 : f32 to vector<1x256xf32>
    %177 = arith.mulf %164, %176 : vector<1x256xf32>
    %178 = vector.broadcast %175 : f32 to vector<1x256xf32>
    %179 = arith.mulf %168, %178 : vector<1x256xf32>
    %180 = arith.addf %177, %179 : vector<1x256xf32>
    %181 = arith.index_cast %c6_i32 : i32 to index
    %c0_53 = arith.constant 0 : index
    %182 = vector.load %arg6[%181, %c0_53] : memref<16x256xf32, #tpu.memory_space<vmem>>, vector<1x256xf32>
    tpu.vector_store %arg6[%181, %c0_53], %180 {strides = array<i32>} : memref<16x256xf32, #tpu.memory_space<vmem>>, vector<1x256xf32>,
    %c7_i32 = arith.constant 7 : i32
    %183 = arith.index_cast %c7_i32 : i32 to index
    %184 = memref.load %arg1[%183] : memref<16xi32, #tpu.memory_space<smem>>
    %185 = arith.index_cast %c7_i32 : i32 to index
    %186 = memref.load %arg2[%185] : memref<16xi32, #tpu.memory_space<smem>>
    %c0_i32_54 = arith.constant 0 : i32
    %c255_i32_55 = arith.constant 255 : i32
    %187 = arith.maxsi %c0_i32_54, %184 : i32
    %188 = arith.minsi %c255_i32_55, %187 : i32
    %189 = arith.index_cast %188 : i32 to index
    %c0_56 = arith.constant 0 : index
    %190 = vector.load %arg4[%189, %c0_56] : memref<256x256xf32, #tpu.memory_space<vmem>>, vector<1x256xf32>
    %c0_i32_57 = arith.constant 0 : i32
    %c63_i32_58 = arith.constant 63 : i32
    %191 = arith.maxsi %c0_i32_57, %186 : i32
    %192 = arith.minsi %c63_i32_58, %191 : i32
    %193 = arith.index_cast %192 : i32 to index
    %c0_59 = arith.constant 0 : index
    %194 = vector.load %arg5[%193, %c0_59] : memref<64x256xf32, #tpu.memory_space<vmem>>, vector<1x256xf32>
    %195 = arith.cmpi slt, %c7_i32, %0 : i32
    %196 = arith.extui %195 : i1 to i32
    %197 = arith.sitofp %196 : i32 to f32
    %c0_i32_60 = arith.constant 0 : i32
    %198 = arith.cmpi sge, %186, %c0_i32_60 : i32
    %199 = arith.andi %195, %198 : i1
    %200 = arith.extui %199 : i1 to i32
    %201 = arith.sitofp %200 : i32 to f32
    %202 = vector.broadcast %197 : f32 to vector<1x256xf32>
    %203 = arith.mulf %190, %202 : vector<1x256xf32>
    %204 = vector.broadcast %201 : f32 to vector<1x256xf32>
    %205 = arith.mulf %194, %204 : vector<1x256xf32>
    %206 = arith.addf %203, %205 : vector<1x256xf32>
    %207 = arith.index_cast %c7_i32 : i32 to index
    %c0_61 = arith.constant 0 : index
    %208 = vector.load %arg6[%207, %c0_61] : memref<16x256xf32, #tpu.memory_space<vmem>>, vector<1x256xf32>
    tpu.vector_store %arg6[%207, %c0_61], %206 {strides = array<i32>} : memref<16x256xf32, #tpu.memory_space<vmem>>, vector<1x256xf32>,
    %c8_i32 = arith.constant 8 : i32
    %209 = arith.index_cast %c8_i32 : i32 to index
    %210 = memref.load %arg1[%209] : memref<16xi32, #tpu.memory_space<smem>>
    %211 = arith.index_cast %c8_i32 : i32 to index
    %212 = memref.load %arg2[%211] : memref<16xi32, #tpu.memory_space<smem>>
    %c0_i32_62 = arith.constant 0 : i32
    %c255_i32_63 = arith.constant 255 : i32
    %213 = arith.maxsi %c0_i32_62, %210 : i32
    %214 = arith.minsi %c255_i32_63, %213 : i32
    %215 = arith.index_cast %214 : i32 to index
    %c0_64 = arith.constant 0 : index
    %216 = vector.load %arg4[%215, %c0_64] : memref<256x256xf32, #tpu.memory_space<vmem>>, vector<1x256xf32>
    %c0_i32_65 = arith.constant 0 : i32
    %c63_i32_66 = arith.constant 63 : i32
    %217 = arith.maxsi %c0_i32_65, %212 : i32
    %218 = arith.minsi %c63_i32_66, %217 : i32
    %219 = arith.index_cast %218 : i32 to index
    %c0_67 = arith.constant 0 : index
    %220 = vector.load %arg5[%219, %c0_67] : memref<64x256xf32, #tpu.memory_space<vmem>>, vector<1x256xf32>
    %221 = arith.cmpi slt, %c8_i32, %0 : i32
    %222 = arith.extui %221 : i1 to i32
    %223 = arith.sitofp %222 : i32 to f32
    %c0_i32_68 = arith.constant 0 : i32
    %224 = arith.cmpi sge, %212, %c0_i32_68 : i32
    %225 = arith.andi %221, %224 : i1
    %226 = arith.extui %225 : i1 to i32
    %227 = arith.sitofp %226 : i32 to f32
    %228 = vector.broadcast %223 : f32 to vector<1x256xf32>
    %229 = arith.mulf %216, %228 : vector<1x256xf32>
    %230 = vector.broadcast %227 : f32 to vector<1x256xf32>
    %231 = arith.mulf %220, %230 : vector<1x256xf32>
    %232 = arith.addf %229, %231 : vector<1x256xf32>
    %233 = arith.index_cast %c8_i32 : i32 to index
    %c0_69 = arith.constant 0 : index
    %234 = vector.load %arg6[%233, %c0_69] : memref<16x256xf32, #tpu.memory_space<vmem>>, vector<1x256xf32>
    tpu.vector_store %arg6[%233, %c0_69], %232 {strides = array<i32>} : memref<16x256xf32, #tpu.memory_space<vmem>>, vector<1x256xf32>,
    %c9_i32 = arith.constant 9 : i32
    %235 = arith.index_cast %c9_i32 : i32 to index
    %236 = memref.load %arg1[%235] : memref<16xi32, #tpu.memory_space<smem>>
    %237 = arith.index_cast %c9_i32 : i32 to index
    %238 = memref.load %arg2[%237] : memref<16xi32, #tpu.memory_space<smem>>
    %c0_i32_70 = arith.constant 0 : i32
    %c255_i32_71 = arith.constant 255 : i32
    %239 = arith.maxsi %c0_i32_70, %236 : i32
    %240 = arith.minsi %c255_i32_71, %239 : i32
    %241 = arith.index_cast %240 : i32 to index
    %c0_72 = arith.constant 0 : index
    %242 = vector.load %arg4[%241, %c0_72] : memref<256x256xf32, #tpu.memory_space<vmem>>, vector<1x256xf32>
    %c0_i32_73 = arith.constant 0 : i32
    %c63_i32_74 = arith.constant 63 : i32
    %243 = arith.maxsi %c0_i32_73, %238 : i32
    %244 = arith.minsi %c63_i32_74, %243 : i32
    %245 = arith.index_cast %244 : i32 to index
    %c0_75 = arith.constant 0 : index
    %246 = vector.load %arg5[%245, %c0_75] : memref<64x256xf32, #tpu.memory_space<vmem>>, vector<1x256xf32>
    %247 = arith.cmpi slt, %c9_i32, %0 : i32
    %248 = arith.extui %247 : i1 to i32
    %249 = arith.sitofp %248 : i32 to f32
    %c0_i32_76 = arith.constant 0 : i32
    %250 = arith.cmpi sge, %238, %c0_i32_76 : i32
    %251 = arith.andi %247, %250 : i1
    %252 = arith.extui %251 : i1 to i32
    %253 = arith.sitofp %252 : i32 to f32
    %254 = vector.broadcast %249 : f32 to vector<1x256xf32>
    %255 = arith.mulf %242, %254 : vector<1x256xf32>
    %256 = vector.broadcast %253 : f32 to vector<1x256xf32>
    %257 = arith.mulf %246, %256 : vector<1x256xf32>
    %258 = arith.addf %255, %257 : vector<1x256xf32>
    %259 = arith.index_cast %c9_i32 : i32 to index
    %c0_77 = arith.constant 0 : index
    %260 = vector.load %arg6[%259, %c0_77] : memref<16x256xf32, #tpu.memory_space<vmem>>, vector<1x256xf32>
    tpu.vector_store %arg6[%259, %c0_77], %258 {strides = array<i32>} : memref<16x256xf32, #tpu.memory_space<vmem>>, vector<1x256xf32>,
    %c10_i32 = arith.constant 10 : i32
    %261 = arith.index_cast %c10_i32 : i32 to index
    %262 = memref.load %arg1[%261] : memref<16xi32, #tpu.memory_space<smem>>
    %263 = arith.index_cast %c10_i32 : i32 to index
    %264 = memref.load %arg2[%263] : memref<16xi32, #tpu.memory_space<smem>>
    %c0_i32_78 = arith.constant 0 : i32
    %c255_i32_79 = arith.constant 255 : i32
    %265 = arith.maxsi %c0_i32_78, %262 : i32
    %266 = arith.minsi %c255_i32_79, %265 : i32
    %267 = arith.index_cast %266 : i32 to index
    %c0_80 = arith.constant 0 : index
    %268 = vector.load %arg4[%267, %c0_80] : memref<256x256xf32, #tpu.memory_space<vmem>>, vector<1x256xf32>
    %c0_i32_81 = arith.constant 0 : i32
    %c63_i32_82 = arith.constant 63 : i32
    %269 = arith.maxsi %c0_i32_81, %264 : i32
    %270 = arith.minsi %c63_i32_82, %269 : i32
    %271 = arith.index_cast %270 : i32 to index
    %c0_83 = arith.constant 0 : index
    %272 = vector.load %arg5[%271, %c0_83] : memref<64x256xf32, #tpu.memory_space<vmem>>, vector<1x256xf32>
    %273 = arith.cmpi slt, %c10_i32, %0 : i32
    %274 = arith.extui %273 : i1 to i32
    %275 = arith.sitofp %274 : i32 to f32
    %c0_i32_84 = arith.constant 0 : i32
    %276 = arith.cmpi sge, %264, %c0_i32_84 : i32
    %277 = arith.andi %273, %276 : i1
    %278 = arith.extui %277 : i1 to i32
    %279 = arith.sitofp %278 : i32 to f32
    %280 = vector.broadcast %275 : f32 to vector<1x256xf32>
    %281 = arith.mulf %268, %280 : vector<1x256xf32>
    %282 = vector.broadcast %279 : f32 to vector<1x256xf32>
    %283 = arith.mulf %272, %282 : vector<1x256xf32>
    %284 = arith.addf %281, %283 : vector<1x256xf32>
    %285 = arith.index_cast %c10_i32 : i32 to index
    %c0_85 = arith.constant 0 : index
    %286 = vector.load %arg6[%285, %c0_85] : memref<16x256xf32, #tpu.memory_space<vmem>>, vector<1x256xf32>
    tpu.vector_store %arg6[%285, %c0_85], %284 {strides = array<i32>} : memref<16x256xf32, #tpu.memory_space<vmem>>, vector<1x256xf32>,
    %c11_i32 = arith.constant 11 : i32
    %287 = arith.index_cast %c11_i32 : i32 to index
    %288 = memref.load %arg1[%287] : memref<16xi32, #tpu.memory_space<smem>>
    %289 = arith.index_cast %c11_i32 : i32 to index
    %290 = memref.load %arg2[%289] : memref<16xi32, #tpu.memory_space<smem>>
    %c0_i32_86 = arith.constant 0 : i32
    %c255_i32_87 = arith.constant 255 : i32
    %291 = arith.maxsi %c0_i32_86, %288 : i32
    %292 = arith.minsi %c255_i32_87, %291 : i32
    %293 = arith.index_cast %292 : i32 to index
    %c0_88 = arith.constant 0 : index
    %294 = vector.load %arg4[%293, %c0_88] : memref<256x256xf32, #tpu.memory_space<vmem>>, vector<1x256xf32>
    %c0_i32_89 = arith.constant 0 : i32
    %c63_i32_90 = arith.constant 63 : i32
    %295 = arith.maxsi %c0_i32_89, %290 : i32
    %296 = arith.minsi %c63_i32_90, %295 : i32
    %297 = arith.index_cast %296 : i32 to index
    %c0_91 = arith.constant 0 : index
    %298 = vector.load %arg5[%297, %c0_91] : memref<64x256xf32, #tpu.memory_space<vmem>>, vector<1x256xf32>
    %299 = arith.cmpi slt, %c11_i32, %0 : i32
    %300 = arith.extui %299 : i1 to i32
    %301 = arith.sitofp %300 : i32 to f32
    %c0_i32_92 = arith.constant 0 : i32
    %302 = arith.cmpi sge, %290, %c0_i32_92 : i32
    %303 = arith.andi %299, %302 : i1
    %304 = arith.extui %303 : i1 to i32
    %305 = arith.sitofp %304 : i32 to f32
    %306 = vector.broadcast %301 : f32 to vector<1x256xf32>
    %307 = arith.mulf %294, %306 : vector<1x256xf32>
    %308 = vector.broadcast %305 : f32 to vector<1x256xf32>
    %309 = arith.mulf %298, %308 : vector<1x256xf32>
    %310 = arith.addf %307, %309 : vector<1x256xf32>
    %311 = arith.index_cast %c11_i32 : i32 to index
    %c0_93 = arith.constant 0 : index
    %312 = vector.load %arg6[%311, %c0_93] : memref<16x256xf32, #tpu.memory_space<vmem>>, vector<1x256xf32>
    tpu.vector_store %arg6[%311, %c0_93], %310 {strides = array<i32>} : memref<16x256xf32, #tpu.memory_space<vmem>>, vector<1x256xf32>,
    %c12_i32 = arith.constant 12 : i32
    %313 = arith.index_cast %c12_i32 : i32 to index
    %314 = memref.load %arg1[%313] : memref<16xi32, #tpu.memory_space<smem>>
    %315 = arith.index_cast %c12_i32 : i32 to index
    %316 = memref.load %arg2[%315] : memref<16xi32, #tpu.memory_space<smem>>
    %c0_i32_94 = arith.constant 0 : i32
    %c255_i32_95 = arith.constant 255 : i32
    %317 = arith.maxsi %c0_i32_94, %314 : i32
    %318 = arith.minsi %c255_i32_95, %317 : i32
    %319 = arith.index_cast %318 : i32 to index
    %c0_96 = arith.constant 0 : index
    %320 = vector.load %arg4[%319, %c0_96] : memref<256x256xf32, #tpu.memory_space<vmem>>, vector<1x256xf32>
    %c0_i32_97 = arith.constant 0 : i32
    %c63_i32_98 = arith.constant 63 : i32
    %321 = arith.maxsi %c0_i32_97, %316 : i32
    %322 = arith.minsi %c63_i32_98, %321 : i32
    %323 = arith.index_cast %322 : i32 to index
    %c0_99 = arith.constant 0 : index
    %324 = vector.load %arg5[%323, %c0_99] : memref<64x256xf32, #tpu.memory_space<vmem>>, vector<1x256xf32>
    %325 = arith.cmpi slt, %c12_i32, %0 : i32
    %326 = arith.extui %325 : i1 to i32
    %327 = arith.sitofp %326 : i32 to f32
    %c0_i32_100 = arith.constant 0 : i32
    %328 = arith.cmpi sge, %316, %c0_i32_100 : i32
    %329 = arith.andi %325, %328 : i1
    %330 = arith.extui %329 : i1 to i32
    %331 = arith.sitofp %330 : i32 to f32
    %332 = vector.broadcast %327 : f32 to vector<1x256xf32>
    %333 = arith.mulf %320, %332 : vector<1x256xf32>
    %334 = vector.broadcast %331 : f32 to vector<1x256xf32>
    %335 = arith.mulf %324, %334 : vector<1x256xf32>
    %336 = arith.addf %333, %335 : vector<1x256xf32>
    %337 = arith.index_cast %c12_i32 : i32 to index
    %c0_101 = arith.constant 0 : index
    %338 = vector.load %arg6[%337, %c0_101] : memref<16x256xf32, #tpu.memory_space<vmem>>, vector<1x256xf32>
    tpu.vector_store %arg6[%337, %c0_101], %336 {strides = array<i32>} : memref<16x256xf32, #tpu.memory_space<vmem>>, vector<1x256xf32>,
    %c13_i32 = arith.constant 13 : i32
    %339 = arith.index_cast %c13_i32 : i32 to index
    %340 = memref.load %arg1[%339] : memref<16xi32, #tpu.memory_space<smem>>
    %341 = arith.index_cast %c13_i32 : i32 to index
    %342 = memref.load %arg2[%341] : memref<16xi32, #tpu.memory_space<smem>>
    %c0_i32_102 = arith.constant 0 : i32
    %c255_i32_103 = arith.constant 255 : i32
    %343 = arith.maxsi %c0_i32_102, %340 : i32
    %344 = arith.minsi %c255_i32_103, %343 : i32
    %345 = arith.index_cast %344 : i32 to index
    %c0_104 = arith.constant 0 : index
    %346 = vector.load %arg4[%345, %c0_104] : memref<256x256xf32, #tpu.memory_space<vmem>>, vector<1x256xf32>
    %c0_i32_105 = arith.constant 0 : i32
    %c63_i32_106 = arith.constant 63 : i32
    %347 = arith.maxsi %c0_i32_105, %342 : i32
    %348 = arith.minsi %c63_i32_106, %347 : i32
    %349 = arith.index_cast %348 : i32 to index
    %c0_107 = arith.constant 0 : index
    %350 = vector.load %arg5[%349, %c0_107] : memref<64x256xf32, #tpu.memory_space<vmem>>, vector<1x256xf32>
    %351 = arith.cmpi slt, %c13_i32, %0 : i32
    %352 = arith.extui %351 : i1 to i32
    %353 = arith.sitofp %352 : i32 to f32
    %c0_i32_108 = arith.constant 0 : i32
    %354 = arith.cmpi sge, %342, %c0_i32_108 : i32
    %355 = arith.andi %351, %354 : i1
    %356 = arith.extui %355 : i1 to i32
    %357 = arith.sitofp %356 : i32 to f32
    %358 = vector.broadcast %353 : f32 to vector<1x256xf32>
    %359 = arith.mulf %346, %358 : vector<1x256xf32>
    %360 = vector.broadcast %357 : f32 to vector<1x256xf32>
    %361 = arith.mulf %350, %360 : vector<1x256xf32>
    %362 = arith.addf %359, %361 : vector<1x256xf32>
    %363 = arith.index_cast %c13_i32 : i32 to index
    %c0_109 = arith.constant 0 : index
    %364 = vector.load %arg6[%363, %c0_109] : memref<16x256xf32, #tpu.memory_space<vmem>>, vector<1x256xf32>
    tpu.vector_store %arg6[%363, %c0_109], %362 {strides = array<i32>} : memref<16x256xf32, #tpu.memory_space<vmem>>, vector<1x256xf32>,
    %c14_i32 = arith.constant 14 : i32
    %365 = arith.index_cast %c14_i32 : i32 to index
    %366 = memref.load %arg1[%365] : memref<16xi32, #tpu.memory_space<smem>>
    %367 = arith.index_cast %c14_i32 : i32 to index
    %368 = memref.load %arg2[%367] : memref<16xi32, #tpu.memory_space<smem>>
    %c0_i32_110 = arith.constant 0 : i32
    %c255_i32_111 = arith.constant 255 : i32
    %369 = arith.maxsi %c0_i32_110, %366 : i32
    %370 = arith.minsi %c255_i32_111, %369 : i32
    %371 = arith.index_cast %370 : i32 to index
    %c0_112 = arith.constant 0 : index
    %372 = vector.load %arg4[%371, %c0_112] : memref<256x256xf32, #tpu.memory_space<vmem>>, vector<1x256xf32>
    %c0_i32_113 = arith.constant 0 : i32
    %c63_i32_114 = arith.constant 63 : i32
    %373 = arith.maxsi %c0_i32_113, %368 : i32
    %374 = arith.minsi %c63_i32_114, %373 : i32
    %375 = arith.index_cast %374 : i32 to index
    %c0_115 = arith.constant 0 : index
    %376 = vector.load %arg5[%375, %c0_115] : memref<64x256xf32, #tpu.memory_space<vmem>>, vector<1x256xf32>
    %377 = arith.cmpi slt, %c14_i32, %0 : i32
    %378 = arith.extui %377 : i1 to i32
    %379 = arith.sitofp %378 : i32 to f32
    %c0_i32_116 = arith.constant 0 : i32
    %380 = arith.cmpi sge, %368, %c0_i32_116 : i32
    %381 = arith.andi %377, %380 : i1
    %382 = arith.extui %381 : i1 to i32
    %383 = arith.sitofp %382 : i32 to f32
    %384 = vector.broadcast %379 : f32 to vector<1x256xf32>
    %385 = arith.mulf %372, %384 : vector<1x256xf32>
    %386 = vector.broadcast %383 : f32 to vector<1x256xf32>
    %387 = arith.mulf %376, %386 : vector<1x256xf32>
    %388 = arith.addf %385, %387 : vector<1x256xf32>
    %389 = arith.index_cast %c14_i32 : i32 to index
    %c0_117 = arith.constant 0 : index
    %390 = vector.load %arg6[%389, %c0_117] : memref<16x256xf32, #tpu.memory_space<vmem>>, vector<1x256xf32>
    tpu.vector_store %arg6[%389, %c0_117], %388 {strides = array<i32>} : memref<16x256xf32, #tpu.memory_space<vmem>>, vector<1x256xf32>,
    %c15_i32 = arith.constant 15 : i32
    %391 = arith.index_cast %c15_i32 : i32 to index
    %392 = memref.load %arg1[%391] : memref<16xi32, #tpu.memory_space<smem>>
    %393 = arith.index_cast %c15_i32 : i32 to index
    %394 = memref.load %arg2[%393] : memref<16xi32, #tpu.memory_space<smem>>
    %c0_i32_118 = arith.constant 0 : i32
    %c255_i32_119 = arith.constant 255 : i32
    %395 = arith.maxsi %c0_i32_118, %392 : i32
    %396 = arith.minsi %c255_i32_119, %395 : i32
    %397 = arith.index_cast %396 : i32 to index
    %c0_120 = arith.constant 0 : index
    %398 = vector.load %arg4[%397, %c0_120] : memref<256x256xf32, #tpu.memory_space<vmem>>, vector<1x256xf32>
    %c0_i32_121 = arith.constant 0 : i32
    %c63_i32_122 = arith.constant 63 : i32
    %399 = arith.maxsi %c0_i32_121, %394 : i32
    %400 = arith.minsi %c63_i32_122, %399 : i32
    %401 = arith.index_cast %400 : i32 to index
    %c0_123 = arith.constant 0 : index
    %402 = vector.load %arg5[%401, %c0_123] : memref<64x256xf32, #tpu.memory_space<vmem>>, vector<1x256xf32>
    %403 = arith.cmpi slt, %c15_i32, %0 : i32
    %404 = arith.extui %403 : i1 to i32
    %405 = arith.sitofp %404 : i32 to f32
    %c0_i32_124 = arith.constant 0 : i32
    %406 = arith.cmpi sge, %394, %c0_i32_124 : i32
    %407 = arith.andi %403, %406 : i1
    %408 = arith.extui %407 : i1 to i32
    %409 = arith.sitofp %408 : i32 to f32
    %410 = vector.broadcast %405 : f32 to vector<1x256xf32>
    %411 = arith.mulf %398, %410 : vector<1x256xf32>
    %412 = vector.broadcast %409 : f32 to vector<1x256xf32>
    %413 = arith.mulf %402, %412 : vector<1x256xf32>
    %414 = arith.addf %411, %413 : vector<1x256xf32>
    %415 = arith.index_cast %c15_i32 : i32 to index
    %c0_125 = arith.constant 0 : index
    %416 = vector.load %arg6[%415, %c0_125] : memref<16x256xf32, #tpu.memory_space<vmem>>, vector<1x256xf32>
    tpu.vector_store %arg6[%415, %c0_125], %414 {strides = array<i32>} : memref<16x256xf32, #tpu.memory_space<vmem>>, vector<1x256xf32>,
    %c16_i32 = arith.constant 16 : i32
    return
  }
  func.func @transform_0(%arg0: i32, %arg1: memref<16xi32, #tpu.memory_space<smem>>, %arg2: memref<16xi32, #tpu.memory_space<smem>>, %arg3: memref<1xi32, #tpu.memory_space<smem>>) -> (i32, i32) {
    %c0_i32 = arith.constant 0 : i32
    %c0_i32_0 = arith.constant 0 : i32
    return %c0_i32, %arg0 : i32, i32
  }
  func.func @transform_1(%arg0: i32, %arg1: memref<16xi32, #tpu.memory_space<smem>>, %arg2: memref<16xi32, #tpu.memory_space<smem>>, %arg3: memref<1xi32, #tpu.memory_space<smem>>) -> (i32, i32) {
    %c0_i32 = arith.constant 0 : i32
    %c0_i32_0 = arith.constant 0 : i32
    return %c0_i32, %arg0 : i32, i32
  }
  func.func @transform_2(%arg0: i32, %arg1: memref<16xi32, #tpu.memory_space<smem>>, %arg2: memref<16xi32, #tpu.memory_space<smem>>, %arg3: memref<1xi32, #tpu.memory_space<smem>>) -> (i32, i32) {
    %c0_i32 = arith.constant 0 : i32
    %c0_i32_0 = arith.constant 0 : i32
    return %c0_i32, %arg0 : i32, i32
  }
}

</mosaic_0001>

<llo_original>
// kernel: _pipeline_forward.1
$region0: #{_pipeline_forward.1}
  #allocation0 [shape = 'u32[]', space=smem, size = 0x4, offset = 0x4, fixed_abs, tag = 'smem constant byte address 0x4 - core index']
  #allocation1 [shape = 'u32[144,128]{1,0:T(1,128)}', space=vmem, size = 0x12000, scoped, tag = 'internal scratch']
  #allocation2 [shape = 's32[1]{0}', space=sflag, size = 0x4, scoped, tag = 'scoped memory for _pipeline_forward.1']
  #allocation3 [shape = 'u8[512]{0}', space=smem, size = 0x200, scoped, tag = 'prefetched SMEM operand 0']
  #allocation4 [shape = 'u8[512]{0}', space=smem, size = 0x200, scoped, tag = 'prefetched SMEM operand 1']
  #allocation5 [shape = 's32[1]{0:T(128)S(6)}', space=smem, size = 0x200, scoped, tag = 'prefetched SMEM operand 2']
  %s0 = inlined_call_operand.vmem [shape: s32[16], index: 0, kind: input, shape index: {}]
  %s1 = inlined_call_operand.vmem [shape: s32[16], index: 1, kind: input, shape index: {}]
  %s2 = inlined_call_operand.<no memory space> [shape: s32[1], index: 2, kind: input, shape index: {}]
  %s3 = inlined_call_operand.hbm [shape: f32[256,256], index: 3, kind: input, shape index: {}]
  %s4 = inlined_call_operand.hbm [shape: f32[64,256], index: 4, kind: input, shape index: {}]
  %s5 = inlined_call_operand.vmem [shape: f32[16,256], index: 5, kind: output, shape index: {}]
  %s6 = sld [smem:[#allocation0]]
  $region26: #{_pipeline_forward.1} parent=0
    _
  %s8 = ssub.s32 1, %s6
  %s9 = scalar_select 0, %s8, %s6
  %s10 = sshll.u32 %s0, 4
  %s11 = int_to_ptr.vmem [resolvable:$true] %s10
  %13 = dma.vmem_to_smem %s11, 16, [#allocation3], [#allocation2]
  %s14 = sshll.u32 %s1, 4
  %s15 = int_to_ptr.vmem [resolvable:$true] %s14
  %17 = dma.vmem_to_smem %s15, 16, [#allocation4], [#allocation2]
  %18 = sst [smem:[#allocation5]] %s2
  %19 = dma.done [#allocation2], 32
  %20 = sfence
  $region1: #{_pipeline_forward.1} parent=0
    #allocation6 [shape = 'u8[262144]{0}', space=vmem, size = 0x40000, scoped, tag = 'input window, operand 3, single buffered']
    #allocation7 [shape = 's32[1]{0}', space=sflag, size = 0x4, scoped, tag = 'scoped memory for _pipeline_forward.1']
    #allocation8 [shape = 'u8[65536]{0}', space=vmem, size = 0x10000, scoped, tag = 'input window, operand 4, single buffered']
    #allocation9 [shape = 's32[1]{0}', space=sflag, size = 0x4, scoped, tag = 'scoped memory for _pipeline_forward.1']
    %21 = vsyncpa [#allocation7], 0
    %22 = vsyncpa [#allocation9], 0
    // Predicated region
    $region2: #{_pipeline_forward.1} parent=1 // pred_check
      _
    $region3: #{_pipeline_forward.1} parent=1 // pred_check_branch
      %24 = sbr.rel (0) target = $region5
    $region4: #{_pipeline_forward.1} parent=1 // pred_region
      %s26 = ssub.s32 8192, 8192
      %27 = vsyncadd [#allocation7], %s26
      %s28 = sshll.u32 [#allocation6], 4
      %s29 = int_to_ptr.vmem [resolvable:$true] %s28
      %34 = dma.hbm_to_vmem [thread:$0]  %s3, 8192, %s29, [#allocation7], 256, 256, 16
    $region5: #{_pipeline_forward.1} parent=1 // pred_fallthru
      _
    // Predicated region
    $region6: #{_pipeline_forward.1} parent=1 // pred_check
      _
    $region7: #{_pipeline_forward.1} parent=1 // pred_check_branch
      %36 = sbr.rel (0) target = $region9
    $region8: #{_pipeline_forward.1} parent=1 // pred_region
      %s38 = ssub.s32 2048, 2048
      %39 = vsyncadd [#allocation9], %s38
      %s40 = sshll.u32 [#allocation8], 4
      %s41 = int_to_ptr.vmem [resolvable:$true] %s40
      %46 = dma.hbm_to_vmem [thread:$0]  %s4, 2048, %s41, [#allocation9], 256, 256, 16
    $region9: #{_pipeline_forward.1} parent=1 // pred_fallthru
      _
    // Predicated region
    $region10: #{_pipeline_forward.1} parent=1 // pred_check
      _
    $region11: #{_pipeline_forward.1} parent=1 // pred_check_branch
      %48 = sbr.rel (0) target = $region13
    $region12: #{_pipeline_forward.1} parent=1 // pred_region
      %49 = dma.done [#allocation7], 8192
    $region13: #{_pipeline_forward.1} parent=1 // pred_fallthru
      _
    // Predicated region
    $region14: #{_pipeline_forward.1} parent=1 // pred_check
      _
    $region15: #{_pipeline_forward.1} parent=1 // pred_check_branch
      %51 = sbr.rel (0) target = $region17
    $region16: #{_pipeline_forward.1} parent=1 // pred_region
      %52 = dma.done [#allocation9], 2048
    $region17: #{_pipeline_forward.1} parent=1 // pred_fallthru
      _
    %s53 = sld [smem:[#allocation5]]
    %s54 = sld [smem:[#allocation3]]
    %s55 = sld [smem:[#allocation4]]
    %p56 = scmp.gt.s32.totalorder %s54, 0
    %s57 = scalar_select %p56, %s54, 0
    %p58 = scmp.lt.s32.totalorder %s57, 255
    %s59 = scalar_select %p58, %s57, 255
    %s60 = sshra.s32 %s59, 3
    %s61 = sand.u32 %s59, 7
    %s62 = sshra.s32 %s59, 3
    %s63 = sand.u32 %s59, 7
    %s64 = smul.u32 %s60, 2
    %s65 = smul.u32 %s64, 8
    %s66 = sadd.s32 %s65, %s63
    %s67 = scalar_lea.vmem [#allocation6], %s66
    %v68 = vld [vmem:[%s67] ss:$8 sm:$0x3]
    %p69 = scmp.gt.s32.totalorder %s55, 0
    %s70 = scalar_select %p69, %s55, 0
    %p71 = scmp.lt.s32.totalorder %s70, 63
    %s72 = scalar_select %p71, %s70, 63
    %s73 = sshra.s32 %s72, 3
    %s74 = sand.u32 %s72, 7
    %s75 = sshra.s32 %s72, 3
    %s76 = sand.u32 %s72, 7
    %s77 = smul.u32 %s73, 2
    %s78 = smul.u32 %s77, 8
    %s79 = sadd.s32 %s78, %s76
    %s80 = scalar_lea.vmem [#allocation8], %s79
    %v81 = vld [vmem:[%s80] ss:$8 sm:$0x3]
    %p82 = scmp.gt.s32.totalorder %s53, 0
    %s83 = scalar_select %p82, 1, 0
    %s84 = scvt.s32.f32 %s83
    %p85 = scmp.ge.s32.totalorder %s55, 0
    %p86 = pnand %p82, %p85
    %p87 = pneg %p86
    %s88 = scalar_select %p87, 1, 0
    %s89 = scvt.s32.f32 %s88
    %v90 = vstv %s84
    %v91 = vmul.f32 %v68, %v90
    %v92 = vstv %s89
    %v93 = vmul.f32 %v81, %v92
    %v94 = vadd.f32 %v91, %v93
    %v95 = vlaneseq
    %vm96 = vcmp.ge.s32.totalorder %v95, 0
    %vm97 = vcmp.lt.s32.totalorder %v95, 256
    %vm98 = vmand %vm96, %vm97
    %99 = vst.msk [vmem:[%s5] ss:$8 sm:$0x3] %vm98, %v94
    %100 = vst.msk [vmem:[%s5] ss:$8 sm:$0x0] %vm98, %v94
    %s101 = sld [smem:[#allocation3 + $0x1]]
    %s102 = sld [smem:[#allocation4 + $0x1]]
    %p103 = scmp.gt.s32.totalorder %s101, 0
    %s104 = scalar_select %p103, %s101, 0
    %p105 = scmp.lt.s32.totalorder %s104, 255
    %s106 = scalar_select %p105, %s104, 255
    %s107 = sshra.s32 %s106, 3
    %s108 = sand.u32 %s106, 7
    %s109 = sshra.s32 %s106, 3
    %s110 = sand.u32 %s106, 7
    %s111 = smul.u32 %s107, 2
    %s112 = smul.u32 %s111, 8
    %s113 = sadd.s32 %s112, %s110
    %s114 = scalar_lea.vmem [#allocation6], %s113
    %v115 = vld [vmem:[%s114] ss:$8 sm:$0x3]
    %p116 = scmp.gt.s32.totalorder %s102, 0
    %s117 = scalar_select %p116, %s102, 0
    %p118 = scmp.lt.s32.totalorder %s117, 63
    %s119 = scalar_select %p118, %s117, 63
    %s120 = sshra.s32 %s119, 3
    %s121 = sand.u32 %s119, 7
    %s122 = sshra.s32 %s119, 3
    %s123 = sand.u32 %s119, 7
    %s124 = smul.u32 %s120, 2
    %s125 = smul.u32 %s124, 8
    %s126 = sadd.s32 %s125, %s123
    %s127 = scalar_lea.vmem [#allocation8], %s126
    %v128 = vld [vmem:[%s127] ss:$8 sm:$0x3]
    %p129 = scmp.gt.s32.totalorder %s53, 1
    %s130 = scalar_select %p129, 1, 0
    %s131 = scvt.s32.f32 %s130
    %p132 = scmp.ge.s32.totalorder %s102, 0
    %p133 = pnand %p129, %p132
    %p134 = pneg %p133
    %s135 = scalar_select %p134, 1, 0
    %s136 = scvt.s32.f32 %s135
    %v137 = vstv %s131
    %v138 = vmul.f32 %v115, %v137
    %v139 = vstv %s136
    %v140 = vmul.f32 %v128, %v139
    %v141 = vadd.f32 %v138, %v140
    %s142 = scalar_lea.vmem %s5, 1
    %143 = vst.msk [vmem:[%s142] ss:$8 sm:$0x3] %vm98, %v141
    %144 = vst.msk [vmem:[%s142] ss:$8 sm:$0x0] %vm98, %v141
    %s145 = sld [smem:[#allocation3 + $0x2]]
    %s146 = sld [smem:[#allocation4 + $0x2]]
    %p147 = scmp.gt.s32.totalorder %s145, 0
    %s148 = scalar_select %p147, %s145, 0
    %p149 = scmp.lt.s32.totalorder %s148, 255
    %s150 = scalar_select %p149, %s148, 255
    %s151 = sshra.s32 %s150, 3
    %s152 = sand.u32 %s150, 7
    %s153 = sshra.s32 %s150, 3
    %s154 = sand.u32 %s150, 7
    %s155 = smul.u32 %s151, 2
    %s156 = smul.u32 %s155, 8
    %s157 = sadd.s32 %s156, %s154
    %s158 = scalar_lea.vmem [#allocation6], %s157
    %v159 = vld [vmem:[%s158] ss:$8 sm:$0x3]
    %p160 = scmp.gt.s32.totalorder %s146, 0
    %s161 = scalar_select %p160, %s146, 0
    %p162 = scmp.lt.s32.totalorder %s161, 63
    %s163 = scalar_select %p162, %s161, 63
    %s164 = sshra.s32 %s163, 3
    %s165 = sand.u32 %s163, 7
    %s166 = sshra.s32 %s163, 3
    %s167 = sand.u32 %s163, 7
    %s168 = smul.u32 %s164, 2
    %s169 = smul.u32 %s168, 8
    %s170 = sadd.s32 %s169, %s167
    %s171 = scalar_lea.vmem [#allocation8], %s170
    %v172 = vld [vmem:[%s171] ss:$8 sm:$0x3]
    %p173 = scmp.gt.s32.totalorder %s53, 2
    %s174 = scalar_select %p173, 1, 0
    %s175 = scvt.s32.f32 %s174
    %p176 = scmp.ge.s32.totalorder %s146, 0
    %p177 = pnand %p173, %p176
    %p178 = pneg %p177
    %s179 = scalar_select %p178, 1, 0
    %s180 = scvt.s32.f32 %s179
    %v181 = vstv %s175
    %v182 = vmul.f32 %v159, %v181
    %v183 = vstv %s180
    %v184 = vmul.f32 %v172, %v183
    %v185 = vadd.f32 %v182, %v184
    %s186 = scalar_lea.vmem %s5, 2
    %187 = vst.msk [vmem:[%s186] ss:$8 sm:$0x3] %vm98, %v185
    %188 = vst.msk [vmem:[%s186] ss:$8 sm:$0x0] %vm98, %v185
    %s189 = sld [smem:[#allocation3 + $0x3]]
    %s190 = sld [smem:[#allocation4 + $0x3]]
    %p191 = scmp.gt.s32.totalorder %s189, 0
    %s192 = scalar_select %p191, %s189, 0
    %p193 = scmp.lt.s32.totalorder %s192, 255
    %s194 = scalar_select %p193, %s192, 255
    %s195 = sshra.s32 %s194, 3
    %s196 = sand.u32 %s194, 7
    %s197 = sshra.s32 %s194, 3
    %s198 = sand.u32 %s194, 7
    %s199 = smul.u32 %s195, 2
    %s200 = smul.u32 %s199, 8
    %s201 = sadd.s32 %s200, %s198
    %s202 = scalar_lea.vmem [#allocation6], %s201
    %v203 = vld [vmem:[%s202] ss:$8 sm:$0x3]
    %p204 = scmp.gt.s32.totalorder %s190, 0
    %s205 = scalar_select %p204, %s190, 0
    %p206 = scmp.lt.s32.totalorder %s205, 63
    %s207 = scalar_select %p206, %s205, 63
    %s208 = sshra.s32 %s207, 3
    %s209 = sand.u32 %s207, 7
    %s210 = sshra.s32 %s207, 3
    %s211 = sand.u32 %s207, 7
    %s212 = smul.u32 %s208, 2
    %s213 = smul.u32 %s212, 8
    %s214 = sadd.s32 %s213, %s211
    %s215 = scalar_lea.vmem [#allocation8], %s214
    %v216 = vld [vmem:[%s215] ss:$8 sm:$0x3]
    %p217 = scmp.gt.s32.totalorder %s53, 3
    %s218 = scalar_select %p217, 1, 0
    %s219 = scvt.s32.f32 %s218
    %p220 = scmp.ge.s32.totalorder %s190, 0
    %p221 = pnand %p217, %p220
    %p222 = pneg %p221
    %s223 = scalar_select %p222, 1, 0
    %s224 = scvt.s32.f32 %s223
    %v225 = vstv %s219
    %v226 = vmul.f32 %v203, %v225
    %v227 = vstv %s224
    %v228 = vmul.f32 %v216, %v227
    %v229 = vadd.f32 %v226, %v228
    %s230 = scalar_lea.vmem %s5, 3
    %231 = vst.msk [vmem:[%s230] ss:$8 sm:$0x3] %vm98, %v229
    %232 = vst.msk [vmem:[%s230] ss:$8 sm:$0x0] %vm98, %v229
    %s233 = sld [smem:[#allocation3 + $0x4]]
    %s234 = sld [smem:[#allocation4 + $0x4]]
    %p235 = scmp.gt.s32.totalorder %s233, 0
    %s236 = scalar_select %p235, %s233, 0
    %p237 = scmp.lt.s32.totalorder %s236, 255
    %s238 = scalar_select %p237, %s236, 255
    %s239 = sshra.s32 %s238, 3
    %s240 = sand.u32 %s238, 7
    %s241 = sshra.s32 %s238, 3
    %s242 = sand.u32 %s238, 7
    %s243 = smul.u32 %s239, 2
    %s244 = smul.u32 %s243, 8
    %s245 = sadd.s32 %s244, %s242
    %s246 = scalar_lea.vmem [#allocation6], %s245
    %v247 = vld [vmem:[%s246] ss:$8 sm:$0x3]
    %p248 = scmp.gt.s32.totalorder %s234, 0
    %s249 = scalar_select %p248, %s234, 0
    %p250 = scmp.lt.s32.totalorder %s249, 63
    %s251 = scalar_select %p250, %s249, 63
    %s252 = sshra.s32 %s251, 3
    %s253 = sand.u32 %s251, 7
    %s254 = sshra.s32 %s251, 3
    %s255 = sand.u32 %s251, 7
    %s256 = smul.u32 %s252, 2
    %s257 = smul.u32 %s256, 8
    %s258 = sadd.s32 %s257, %s255
    %s259 = scalar_lea.vmem [#allocation8], %s258
    %v260 = vld [vmem:[%s259] ss:$8 sm:$0x3]
    %p261 = scmp.gt.s32.totalorder %s53, 4
    %s262 = scalar_select %p261, 1, 0
    %s263 = scvt.s32.f32 %s262
    %p264 = scmp.ge.s32.totalorder %s234, 0
    %p265 = pnand %p261, %p264
    %p266 = pneg %p265
    %s267 = scalar_select %p266, 1, 0
    %s268 = scvt.s32.f32 %s267
    %v269 = vstv %s263
    %v270 = vmul.f32 %v247, %v269
    %v271 = vstv %s268
    %v272 = vmul.f32 %v260, %v271
    %v273 = vadd.f32 %v270, %v272
    %s274 = scalar_lea.vmem %s5, 4
    %275 = vst.msk [vmem:[%s274] ss:$8 sm:$0x3] %vm98, %v273
    %276 = vst.msk [vmem:[%s274] ss:$8 sm:$0x0] %vm98, %v273
    %s277 = sld [smem:[#allocation3 + $0x5]]
    %s278 = sld [smem:[#allocation4 + $0x5]]
    %p279 = scmp.gt.s32.totalorder %s277, 0
    %s280 = scalar_select %p279, %s277, 0
    %p281 = scmp.lt.s32.totalorder %s280, 255
    %s282 = scalar_select %p281, %s280, 255
    %s283 = sshra.s32 %s282, 3
    %s284 = sand.u32 %s282, 7
    %s285 = sshra.s32 %s282, 3
    %s286 = sand.u32 %s282, 7
    %s287 = smul.u32 %s283, 2
    %s288 = smul.u32 %s287, 8
    %s289 = sadd.s32 %s288, %s286
    %s290 = scalar_lea.vmem [#allocation6], %s289
    %v291 = vld [vmem:[%s290] ss:$8 sm:$0x3]
    %p292 = scmp.gt.s32.totalorder %s278, 0
    %s293 = scalar_select %p292, %s278, 0
    %p294 = scmp.lt.s32.totalorder %s293, 63
    %s295 = scalar_select %p294, %s293, 63
    %s296 = sshra.s32 %s295, 3
    %s297 = sand.u32 %s295, 7
    %s298 = sshra.s32 %s295, 3
    %s299 = sand.u32 %s295, 7
    %s300 = smul.u32 %s296, 2
    %s301 = smul.u32 %s300, 8
    %s302 = sadd.s32 %s301, %s299
    %s303 = scalar_lea.vmem [#allocation8], %s302
    %v304 = vld [vmem:[%s303] ss:$8 sm:$0x3]
    %p305 = scmp.gt.s32.totalorder %s53, 5
    %s306 = scalar_select %p305, 1, 0
    %s307 = scvt.s32.f32 %s306
    %p308 = scmp.ge.s32.totalorder %s278, 0
    %p309 = pnand %p305, %p308
    %p310 = pneg %p309
    %s311 = scalar_select %p310, 1, 0
    %s312 = scvt.s32.f32 %s311
    %v313 = vstv %s307
    %v314 = vmul.f32 %v291, %v313
    %v315 = vstv %s312
    %v316 = vmul.f32 %v304, %v315
    %v317 = vadd.f32 %v314, %v316
    %s318 = scalar_lea.vmem %s5, 5
    %319 = vst.msk [vmem:[%s318] ss:$8 sm:$0x3] %vm98, %v317
    %320 = vst.msk [vmem:[%s318] ss:$8 sm:$0x0] %vm98, %v317
    %s321 = sld [smem:[#allocation3 + $0x6]]
    %s322 = sld [smem:[#allocation4 + $0x6]]
    %p323 = scmp.gt.s32.totalorder %s321, 0
    %s324 = scalar_select %p323, %s321, 0
    %p325 = scmp.lt.s32.totalorder %s324, 255
    %s326 = scalar_select %p325, %s324, 255
    %s327 = sshra.s32 %s326, 3
    %s328 = sand.u32 %s326, 7
    %s329 = sshra.s32 %s326, 3
    %s330 = sand.u32 %s326, 7
    %s331 = smul.u32 %s327, 2
    %s332 = smul.u32 %s331, 8
    %s333 = sadd.s32 %s332, %s330
    %s334 = scalar_lea.vmem [#allocation6], %s333
    %v335 = vld [vmem:[%s334] ss:$8 sm:$0x3]
    %p336 = scmp.gt.s32.totalorder %s322, 0
    %s337 = scalar_select %p336, %s322, 0
    %p338 = scmp.lt.s32.totalorder %s337, 63
    %s339 = scalar_select %p338, %s337, 63
    %s340 = sshra.s32 %s339, 3
    %s341 = sand.u32 %s339, 7
    %s342 = sshra.s32 %s339, 3
    %s343 = sand.u32 %s339, 7
    %s344 = smul.u32 %s340, 2
    %s345 = smul.u32 %s344, 8
    %s346 = sadd.s32 %s345, %s343
    %s347 = scalar_lea.vmem [#allocation8], %s346
    %v348 = vld [vmem:[%s347] ss:$8 sm:$0x3]
    %p349 = scmp.gt.s32.totalorder %s53, 6
    %s350 = scalar_select %p349, 1, 0
    %s351 = scvt.s32.f32 %s350
    %p352 = scmp.ge.s32.totalorder %s322, 0
    %p353 = pnand %p349, %p352
    %p354 = pneg %p353
    %s355 = scalar_select %p354, 1, 0
    %s356 = scvt.s32.f32 %s355
    %v357 = vstv %s351
    %v358 = vmul.f32 %v335, %v357
    %v359 = vstv %s356
    %v360 = vmul.f32 %v348, %v359
    %v361 = vadd.f32 %v358, %v360
    %s362 = scalar_lea.vmem %s5, 6
    %363 = vst.msk [vmem:[%s362] ss:$8 sm:$0x3] %vm98, %v361
    %364 = vst.msk [vmem:[%s362] ss:$8 sm:$0x0] %vm98, %v361
    %s365 = sld [smem:[#allocation3 + $0x7]]
    %s366 = sld [smem:[#allocation4 + $0x7]]
    %p367 = scmp.gt.s32.totalorder %s365, 0
    %s368 = scalar_select %p367, %s365, 0
    %p369 = scmp.lt.s32.totalorder %s368, 255
    %s370 = scalar_select %p369, %s368, 255
    %s371 = sshra.s32 %s370, 3
    %s372 = sand.u32 %s370, 7
    %s373 = sshra.s32 %s370, 3
    %s374 = sand.u32 %s370, 7
    %s375 = smul.u32 %s371, 2
    %s376 = smul.u32 %s375, 8
    %s377 = sadd.s32 %s376, %s374
    %s378 = scalar_lea.vmem [#allocation6], %s377
    %v379 = vld [vmem:[%s378] ss:$8 sm:$0x3]
    %p380 = scmp.gt.s32.totalorder %s366, 0
    %s381 = scalar_select %p380, %s366, 0
    %p382 = scmp.lt.s32.totalorder %s381, 63
    %s383 = scalar_select %p382, %s381, 63
    %s384 = sshra.s32 %s383, 3
    %s385 = sand.u32 %s383, 7
    %s386 = sshra.s32 %s383, 3
    %s387 = sand.u32 %s383, 7
    %s388 = smul.u32 %s384, 2
    %s389 = smul.u32 %s388, 8
    %s390 = sadd.s32 %s389, %s387
    %s391 = scalar_lea.vmem [#allocation8], %s390
    %v392 = vld [vmem:[%s391] ss:$8 sm:$0x3]
    %p393 = scmp.gt.s32.totalorder %s53, 7
    %s394 = scalar_select %p393, 1, 0
    %s395 = scvt.s32.f32 %s394
    %p396 = scmp.ge.s32.totalorder %s366, 0
    %p397 = pnand %p393, %p396
    %p398 = pneg %p397
    %s399 = scalar_select %p398, 1, 0
    %s400 = scvt.s32.f32 %s399
    %v401 = vstv %s395
    %v402 = vmul.f32 %v379, %v401
    %v403 = vstv %s400
    %v404 = vmul.f32 %v392, %v403
    %v405 = vadd.f32 %v402, %v404
    %s406 = scalar_lea.vmem %s5, 7
    %407 = vst.msk [vmem:[%s406] ss:$8 sm:$0x3] %vm98, %v405
    %408 = vst.msk [vmem:[%s406] ss:$8 sm:$0x0] %vm98, %v405
    %s409 = sld [smem:[#allocation3 + $0x8]]
    %s410 = sld [smem:[#allocation4 + $0x8]]
    %p411 = scmp.gt.s32.totalorder %s409, 0
    %s412 = scalar_select %p411, %s409, 0
    %p413 = scmp.lt.s32.totalorder %s412, 255
    %s414 = scalar_select %p413, %s412, 255
    %s415 = sshra.s32 %s414, 3
    %s416 = sand.u32 %s414, 7
    %s417 = sshra.s32 %s414, 3
    %s418 = sand.u32 %s414, 7
    %s419 = smul.u32 %s415, 2
    %s420 = smul.u32 %s419, 8
    %s421 = sadd.s32 %s420, %s418
    %s422 = scalar_lea.vmem [#allocation6], %s421
    %v423 = vld [vmem:[%s422] ss:$8 sm:$0x3]
    %p424 = scmp.gt.s32.totalorder %s410, 0
    %s425 = scalar_select %p424, %s410, 0
    %p426 = scmp.lt.s32.totalorder %s425, 63
    %s427 = scalar_select %p426, %s425, 63
    %s428 = sshra.s32 %s427, 3
    %s429 = sand.u32 %s427, 7
    %s430 = sshra.s32 %s427, 3
    %s431 = sand.u32 %s427, 7
    %s432 = smul.u32 %s428, 2
    %s433 = smul.u32 %s432, 8
    %s434 = sadd.s32 %s433, %s431
    %s435 = scalar_lea.vmem [#allocation8], %s434
    %v436 = vld [vmem:[%s435] ss:$8 sm:$0x3]
    %p437 = scmp.gt.s32.totalorder %s53, 8
    %s438 = scalar_select %p437, 1, 0
    %s439 = scvt.s32.f32 %s438
    %p440 = scmp.ge.s32.totalorder %s410, 0
    %p441 = pnand %p437, %p440
    %p442 = pneg %p441
    %s443 = scalar_select %p442, 1, 0
    %s444 = scvt.s32.f32 %s443
    %v445 = vstv %s439
    %v446 = vmul.f32 %v423, %v445
    %v447 = vstv %s444
    %v448 = vmul.f32 %v436, %v447
    %v449 = vadd.f32 %v446, %v448
    %s450 = scalar_lea.vmem %s5, 16
    %451 = vst.msk [vmem:[%s450] ss:$8 sm:$0x3] %vm98, %v449
    %452 = vst.msk [vmem:[%s450] ss:$8 sm:$0x0] %vm98, %v449
    %s453 = sld [smem:[#allocation3 + $0x9]]
    %s454 = sld [smem:[#allocation4 + $0x9]]
    %p455 = scmp.gt.s32.totalorder %s453, 0
    %s456 = scalar_select %p455, %s453, 0
    %p457 = scmp.lt.s32.totalorder %s456, 255
    %s458 = scalar_select %p457, %s456, 255
    %s459 = sshra.s32 %s458, 3
    %s460 = sand.u32 %s458, 7
    %s461 = sshra.s32 %s458, 3
    %s462 = sand.u32 %s458, 7
    %s463 = smul.u32 %s459, 2
    %s464 = smul.u32 %s463, 8
    %s465 = sadd.s32 %s464, %s462
    %s466 = scalar_lea.vmem [#allocation6], %s465
    %v467 = vld [vmem:[%s466] ss:$8 sm:$0x3]
    %p468 = scmp.gt.s32.totalorder %s454, 0
    %s469 = scalar_select %p468, %s454, 0
    %p470 = scmp.lt.s32.totalorder %s469, 63
    %s471 = scalar_select %p470, %s469, 63
    %s472 = sshra.s32 %s471, 3
    %s473 = sand.u32 %s471, 7
    %s474 = sshra.s32 %s471, 3
    %s475 = sand.u32 %s471, 7
    %s476 = smul.u32 %s472, 2
    %s477 = smul.u32 %s476, 8
    %s478 = sadd.s32 %s477, %s475
    %s479 = scalar_lea.vmem [#allocation8], %s478
    %v480 = vld [vmem:[%s479] ss:$8 sm:$0x3]
    %p481 = scmp.gt.s32.totalorder %s53, 9
    %s482 = scalar_select %p481, 1, 0
    %s483 = scvt.s32.f32 %s482
    %p484 = scmp.ge.s32.totalorder %s454, 0
    %p485 = pnand %p481, %p484
    %p486 = pneg %p485
    %s487 = scalar_select %p486, 1, 0
    %s488 = scvt.s32.f32 %s487
    %v489 = vstv %s483
    %v490 = vmul.f32 %v467, %v489
    %v491 = vstv %s488
    %v492 = vmul.f32 %v480, %v491
    %v493 = vadd.f32 %v490, %v492
    %s494 = scalar_lea.vmem %s5, 17
    %495 = vst.msk [vmem:[%s494] ss:$8 sm:$0x3] %vm98, %v493
    %496 = vst.msk [vmem:[%s494] ss:$8 sm:$0x0] %vm98, %v493
    %s497 = sld [smem:[#allocation3 + $0xa]]
    %s498 = sld [smem:[#allocation4 + $0xa]]
    %p499 = scmp.gt.s32.totalorder %s497, 0
    %s500 = scalar_select %p499, %s497, 0
    %p501 = scmp.lt.s32.totalorder %s500, 255
    %s502 = scalar_select %p501, %s500, 255
    %s503 = sshra.s32 %s502, 3
    %s504 = sand.u32 %s502, 7
    %s505 = sshra.s32 %s502, 3
    %s506 = sand.u32 %s502, 7
    %s507 = smul.u32 %s503, 2
    %s508 = smul.u32 %s507, 8
    %s509 = sadd.s32 %s508, %s506
    %s510 = scalar_lea.vmem [#allocation6], %s509
    %v511 = vld [vmem:[%s510] ss:$8 sm:$0x3]
    %p512 = scmp.gt.s32.totalorder %s498, 0
    %s513 = scalar_select %p512, %s498, 0
    %p514 = scmp.lt.s32.totalorder %s513, 63
    %s515 = scalar_select %p514, %s513, 63
    %s516 = sshra.s32 %s515, 3
    %s517 = sand.u32 %s515, 7
    %s518 = sshra.s32 %s515, 3
    %s519 = sand.u32 %s515, 7
    %s520 = smul.u32 %s516, 2
    %s521 = smul.u32 %s520, 8
    %s522 = sadd.s32 %s521, %s519
    %s523 = scalar_lea.vmem [#allocation8], %s522
    %v524 = vld [vmem:[%s523] ss:$8 sm:$0x3]
    %p525 = scmp.gt.s32.totalorder %s53, 10
    %s526 = scalar_select %p525, 1, 0
    %s527 = scvt.s32.f32 %s526
    %p528 = scmp.ge.s32.totalorder %s498, 0
    %p529 = pnand %p525, %p528
    %p530 = pneg %p529
    %s531 = scalar_select %p530, 1, 0
    %s532 = scvt.s32.f32 %s531
    %v533 = vstv %s527
    %v534 = vmul.f32 %v511, %v533
    %v535 = vstv %s532
    %v536 = vmul.f32 %v524, %v535
    %v537 = vadd.f32 %v534, %v536
    %s538 = scalar_lea.vmem %s5, 18
    %539 = vst.msk [vmem:[%s538] ss:$8 sm:$0x3] %vm98, %v537
    %540 = vst.msk [vmem:[%s538] ss:$8 sm:$0x0] %vm98, %v537
    %s541 = sld [smem:[#allocation3 + $0xb]]
    %s542 = sld [smem:[#allocation4 + $0xb]]
    %p543 = scmp.gt.s32.totalorder %s541, 0
    %s544 = scalar_select %p543, %s541, 0
    %p545 = scmp.lt.s32.totalorder %s544, 255
    %s546 = scalar_select %p545, %s544, 255
    %s547 = sshra.s32 %s546, 3
    %s548 = sand.u32 %s546, 7
    %s549 = sshra.s32 %s546, 3
    %s550 = sand.u32 %s546, 7
    %s551 = smul.u32 %s547, 2
    %s552 = smul.u32 %s551, 8
    %s553 = sadd.s32 %s552, %s550
    %s554 = scalar_lea.vmem [#allocation6], %s553
    %v555 = vld [vmem:[%s554] ss:$8 sm:$0x3]
    %p556 = scmp.gt.s32.totalorder %s542, 0
    %s557 = scalar_select %p556, %s542, 0
    %p558 = scmp.lt.s32.totalorder %s557, 63
    %s559 = scalar_select %p558, %s557, 63
    %s560 = sshra.s32 %s559, 3
    %s561 = sand.u32 %s559, 7
    %s562 = sshra.s32 %s559, 3
    %s563 = sand.u32 %s559, 7
    %s564 = smul.u32 %s560, 2
    %s565 = smul.u32 %s564, 8
    %s566 = sadd.s32 %s565, %s563
    %s567 = scalar_lea.vmem [#allocation8], %s566
    %v568 = vld [vmem:[%s567] ss:$8 sm:$0x3]
    %p569 = scmp.gt.s32.totalorder %s53, 11
    %s570 = scalar_select %p569, 1, 0
    %s571 = scvt.s32.f32 %s570
    %p572 = scmp.ge.s32.totalorder %s542, 0
    %p573 = pnand %p569, %p572
    %p574 = pneg %p573
    %s575 = scalar_select %p574, 1, 0
    %s576 = scvt.s32.f32 %s575
    %v577 = vstv %s571
    %v578 = vmul.f32 %v555, %v577
    %v579 = vstv %s576
    %v580 = vmul.f32 %v568, %v579
    %v581 = vadd.f32 %v578, %v580
    %s582 = scalar_lea.vmem %s5, 19
    %583 = vst.msk [vmem:[%s582] ss:$8 sm:$0x3] %vm98, %v581
    %584 = vst.msk [vmem:[%s582] ss:$8 sm:$0x0] %vm98, %v581
    %s585 = sld [smem:[#allocation3 + $0xc]]
    %s586 = sld [smem:[#allocation4 + $0xc]]
    %p587 = scmp.gt.s32.totalorder %s585, 0
    %s588 = scalar_select %p587, %s585, 0
    %p589 = scmp.lt.s32.totalorder %s588, 255
    %s590 = scalar_select %p589, %s588, 255
    %s591 = sshra.s32 %s590, 3
    %s592 = sand.u32 %s590, 7
    %s593 = sshra.s32 %s590, 3
    %s594 = sand.u32 %s590, 7
    %s595 = smul.u32 %s591, 2
    %s596 = smul.u32 %s595, 8
    %s597 = sadd.s32 %s596, %s594
    %s598 = scalar_lea.vmem [#allocation6], %s597
    %v599 = vld [vmem:[%s598] ss:$8 sm:$0x3]
    %p600 = scmp.gt.s32.totalorder %s586, 0
    %s601 = scalar_select %p600, %s586, 0
    %p602 = scmp.lt.s32.totalorder %s601, 63
    %s603 = scalar_select %p602, %s601, 63
    %s604 = sshra.s32 %s603, 3
    %s605 = sand.u32 %s603, 7
    %s606 = sshra.s32 %s603, 3
    %s607 = sand.u32 %s603, 7
    %s608 = smul.u32 %s604, 2
    %s609 = smul.u32 %s608, 8
    %s610 = sadd.s32 %s609, %s607
    %s611 = scalar_lea.vmem [#allocation8], %s610
    %v612 = vld [vmem:[%s611] ss:$8 sm:$0x3]
    %p613 = scmp.gt.s32.totalorder %s53, 12
    %s614 = scalar_select %p613, 1, 0
    %s615 = scvt.s32.f32 %s614
    %p616 = scmp.ge.s32.totalorder %s586, 0
    %p617 = pnand %p613, %p616
    %p618 = pneg %p617
    %s619 = scalar_select %p618, 1, 0
    %s620 = scvt.s32.f32 %s619
    %v621 = vstv %s615
    %v622 = vmul.f32 %v599, %v621
    %v623 = vstv %s620
    %v624 = vmul.f32 %v612, %v623
    %v625 = vadd.f32 %v622, %v624
    %s626 = scalar_lea.vmem %s5, 20
    %627 = vst.msk [vmem:[%s626] ss:$8 sm:$0x3] %vm98, %v625
    %628 = vst.msk [vmem:[%s626] ss:$8 sm:$0x0] %vm98, %v625
    %s629 = sld [smem:[#allocation3 + $0xd]]
    %s630 = sld [smem:[#allocation4 + $0xd]]
    %p631 = scmp.gt.s32.totalorder %s629, 0
    %s632 = scalar_select %p631, %s629, 0
    %p633 = scmp.lt.s32.totalorder %s632, 255
    %s634 = scalar_select %p633, %s632, 255
    %s635 = sshra.s32 %s634, 3
    %s636 = sand.u32 %s634, 7
    %s637 = sshra.s32 %s634, 3
    %s638 = sand.u32 %s634, 7
    %s639 = smul.u32 %s635, 2
    %s640 = smul.u32 %s639, 8
    %s641 = sadd.s32 %s640, %s638
    %s642 = scalar_lea.vmem [#allocation6], %s641
    %v643 = vld [vmem:[%s642] ss:$8 sm:$0x3]
    %p644 = scmp.gt.s32.totalorder %s630, 0
    %s645 = scalar_select %p644, %s630, 0
    %p646 = scmp.lt.s32.totalorder %s645, 63
    %s647 = scalar_select %p646, %s645, 63
    %s648 = sshra.s32 %s647, 3
    %s649 = sand.u32 %s647, 7
    %s650 = sshra.s32 %s647, 3
    %s651 = sand.u32 %s647, 7
    %s652 = smul.u32 %s648, 2
    %s653 = smul.u32 %s652, 8
    %s654 = sadd.s32 %s653, %s651
    %s655 = scalar_lea.vmem [#allocation8], %s654
    %v656 = vld [vmem:[%s655] ss:$8 sm:$0x3]
    %p657 = scmp.gt.s32.totalorder %s53, 13
    %s658 = scalar_select %p657, 1, 0
    %s659 = scvt.s32.f32 %s658
    %p660 = scmp.ge.s32.totalorder %s630, 0
    %p661 = pnand %p657, %p660
    %p662 = pneg %p661
    %s663 = scalar_select %p662, 1, 0
    %s664 = scvt.s32.f32 %s663
    %v665 = vstv %s659
    %v666 = vmul.f32 %v643, %v665
    %v667 = vstv %s664
    %v668 = vmul.f32 %v656, %v667
    %v669 = vadd.f32 %v666, %v668
    %s670 = scalar_lea.vmem %s5, 21
    %671 = vst.msk [vmem:[%s670] ss:$8 sm:$0x3] %vm98, %v669
    %672 = vst.msk [vmem:[%s670] ss:$8 sm:$0x0] %vm98, %v669
    %s673 = sld [smem:[#allocation3 + $0xe]]
    %s674 = sld [smem:[#allocation4 + $0xe]]
    %p675 = scmp.gt.s32.totalorder %s673, 0
    %s676 = scalar_select %p675, %s673, 0
    %p677 = scmp.lt.s32.totalorder %s676, 255
    %s678 = scalar_select %p677, %s676, 255
    %s679 = sshra.s32 %s678, 3
    %s680 = sand.u32 %s678, 7
    %s681 = sshra.s32 %s678, 3
    %s682 = sand.u32 %s678, 7
    %s683 = smul.u32 %s679, 2
    %s684 = smul.u32 %s683, 8
    %s685 = sadd.s32 %s684, %s682
    %s686 = scalar_lea.vmem [#allocation6], %s685
    %v687 = vld [vmem:[%s686] ss:$8 sm:$0x3]
    %p688 = scmp.gt.s32.totalorder %s674, 0
    %s689 = scalar_select %p688, %s674, 0
    %p690 = scmp.lt.s32.totalorder %s689, 63
    %s691 = scalar_select %p690, %s689, 63
    %s692 = sshra.s32 %s691, 3
    %s693 = sand.u32 %s691, 7
    %s694 = sshra.s32 %s691, 3
    %s695 = sand.u32 %s691, 7
    %s696 = smul.u32 %s692, 2
    %s697 = smul.u32 %s696, 8
    %s698 = sadd.s32 %s697, %s695
    %s699 = scalar_lea.vmem [#allocation8], %s698
    %v700 = vld [vmem:[%s699] ss:$8 sm:$0x3]
    %p701 = scmp.gt.s32.totalorder %s53, 14
    %s702 = scalar_select %p701, 1, 0
    %s703 = scvt.s32.f32 %s702
    %p704 = scmp.ge.s32.totalorder %s674, 0
    %p705 = pnand %p701, %p704
    %p706 = pneg %p705
    %s707 = scalar_select %p706, 1, 0
    %s708 = scvt.s32.f32 %s707
    %v709 = vstv %s703
    %v710 = vmul.f32 %v687, %v709
    %v711 = vstv %s708
    %v712 = vmul.f32 %v700, %v711
    %v713 = vadd.f32 %v710, %v712
    %s714 = scalar_lea.vmem %s5, 22
    %715 = vst.msk [vmem:[%s714] ss:$8 sm:$0x3] %vm98, %v713
    %716 = vst.msk [vmem:[%s714] ss:$8 sm:$0x0] %vm98, %v713
    %s717 = sld [smem:[#allocation3 + $0xf]]
    %s718 = sld [smem:[#allocation4 + $0xf]]
    %p719 = scmp.gt.s32.totalorder %s717, 0
    %s720 = scalar_select %p719, %s717, 0
    %p721 = scmp.lt.s32.totalorder %s720, 255
    %s722 = scalar_select %p721, %s720, 255
    %s723 = sshra.s32 %s722, 3
    %s724 = sand.u32 %s722, 7
    %s725 = sshra.s32 %s722, 3
    %s726 = sand.u32 %s722, 7
    %s727 = smul.u32 %s723, 2
    %s728 = smul.u32 %s727, 8
    %s729 = sadd.s32 %s728, %s726
    %s730 = scalar_lea.vmem [#allocation6], %s729
    %v731 = vld [vmem:[%s730] ss:$8 sm:$0x3]
    %p732 = scmp.gt.s32.totalorder %s718, 0
    %s733 = scalar_select %p732, %s718, 0
    %p734 = scmp.lt.s32.totalorder %s733, 63
    %s735 = scalar_select %p734, %s733, 63
    %s736 = sshra.s32 %s735, 3
    %s737 = sand.u32 %s735, 7
    %s738 = sshra.s32 %s735, 3
    %s739 = sand.u32 %s735, 7
    %s740 = smul.u32 %s736, 2
    %s741 = smul.u32 %s740, 8
    %s742 = sadd.s32 %s741, %s739
    %s743 = scalar_lea.vmem [#allocation8], %s742
    %v744 = vld [vmem:[%s743] ss:$8 sm:$0x3]
    %p745 = scmp.gt.s32.totalorder %s53, 15
    %s746 = scalar_select %p745, 1, 0
    %s747 = scvt.s32.f32 %s746
    %p748 = scmp.ge.s32.totalorder %s718, 0
    %p749 = pnand %p745, %p748
    %p750 = pneg %p749
    %s751 = scalar_select %p750, 1, 0
    %s752 = scvt.s32.f32 %s751
    %v753 = vstv %s747
    %v754 = vmul.f32 %v731, %v753
    %v755 = vstv %s752
    %v756 = vmul.f32 %v744, %v755
    %v757 = vadd.f32 %v754, %v756
    %s758 = scalar_lea.vmem %s5, 23
    %759 = vst.msk [vmem:[%s758] ss:$8 sm:$0x3] %vm98, %v757
    %760 = vst.msk [vmem:[%s758] ss:$8 sm:$0x0] %vm98, %v757
    // Predicated region
    $region18: #{_pipeline_forward.1} parent=1 // pred_check
      _
    $region19: #{_pipeline_forward.1} parent=1 // pred_check_branch
      %762 = sbr.rel (0) target = $region21
    $region20: #{_pipeline_forward.1} parent=1 // pred_region
      _
    $region21: #{_pipeline_forward.1} parent=1 // pred_fallthru
      _
    // Predicated region
    $region22: #{_pipeline_forward.1} parent=1 // pred_check
      _
    $region23: #{_pipeline_forward.1} parent=1 // pred_check_branch
      %764 = sbr.rel (0) target = $region25
    $region24: #{_pipeline_forward.1} parent=1 // pred_region
      _
    $region25: #{_pipeline_forward.1} parent=1 // pred_fallthru
      _
    %765 = vsyncpa [#allocation7], 1
    %766 = vsyncpa [#allocation9], 1

</llo_original>
